<compile_context>
chip_gen: v5e
topology: v5e:2x2
jax: 0.10.0
libtpu: 0.0.40
codegen_flags: <defaults>
</compile_context>

<pallas_src>
import jax
import jax.numpy as jnp
from jax.experimental import pallas as pl
from jax.experimental.pallas import tpu as pltpu


_MIN_SPLIT_BYTES = 1 << 20        # <= 1 MiB: single DMA, grid=(1,)
_MAX_CHUNK_BYTES = 16 << 20       # cap per-grid-step chunk (bounds DMA latency)
_MIN_CHUNK_BYTES = 512 << 10      # floor per-grid-step chunk


def _sublane_min(itemsize):
    # 8 rows for 4-byte dtypes, 16 for 2-byte, 32 for 1-byte.
    return max(8, 32 // itemsize)


def _pick_lane_width(total):
    """Largest multiple of 128 (capped at 2048) that divides `total`."""
    for c in range(2048, 127, -128):
        if total % c == 0:
            return c
    return None


def _pick_fallback_cols(total):
    """total not a multiple of 128: largest divisor <= 2048, prefer mult of 8."""
    cap = min(2048, total)
    best_any = 1
    for c in range(cap, 0, -1):
        if total % c == 0:
            best_any = c
            break
    best_m8 = 0
    start = (cap // 8) * 8
    for c in range(start, 7, -8):
        if total % c == 0:
            best_m8 = c
            break
    # Prefer a multiple-of-8 width unless it is drastically narrower.
    if best_m8 and best_m8 * 8 >= best_any:
        return best_m8
    return best_any


def _pick_row_chunk(rows, cols, itemsize, sub_min):
    """Rows per grid step: sublane-aligned, ~total/4 bytes, 0.5–16 MiB."""
    row_bytes = cols * itemsize
    total_bytes = rows * row_bytes
    if rows <= 2 * sub_min or total_bytes <= _MIN_SPLIT_BYTES:
        return rows
    tgt_bytes = min(_MAX_CHUNK_BYTES, max(_MIN_CHUNK_BYTES, total_bytes // 4))
    rc = (tgt_bytes // row_bytes) // sub_min * sub_min
    rc = max(rc, sub_min)
    rc = min(rc, rows)
    # Prefer a chunk that divides rows exactly (no ragged tail), but only if
    # it is not much smaller than the target.
    if rc < rows:
        for cand in range(rc, max(sub_min, rc // 2) - 1, -sub_min):
            if rows % cand == 0:
                return cand
    return rc


def _make_hbm_copy_kernel(row_chunk, tail_rows, n_chunks, split, sub_min):
    """Kernel: per grid step, DMA one contiguous row-chunk HBM->HBM."""
    half = row_chunk // 2 if split else row_chunk
    full_tail = (tail_rows == row_chunk)

    def _start_copy(x_hbm, o_hbm, sem, start, nrows):
        cp = pltpu.make_async_copy(
            x_hbm.at[pl.ds(start, nrows), :],
            o_hbm.at[pl.ds(start, nrows), :],
            sem,
        )
        cp.start()
        return cp

    def kernel(x_hbm, o_hbm, sems):
        i = pl.program_id(0)
        base = i * row_chunk
        if row_chunk % sub_min == 0:
            base = pl.multiple_of(base, sub_min)

        def do_full():
            if split:
                # Two outstanding DMAs per full chunk.
                cp0 = _start_copy(x_hbm, o_hbm, sems.at[0], base, half)
                cp1 = _start_copy(x_hbm, o_hbm, sems.at[1], base + half, half)
                cp0.wait()
                cp1.wait()
            else:
                cp = _start_copy(x_hbm, o_hbm, sems.at[0], base, row_chunk)
                cp.wait()

        if full_tail:
            do_full()
        else:
            is_tail = i == (n_chunks - 1)

            @pl.when(i < n_chunks - 1)
            def _():
                do_full()

            @pl.when(is_tail)
            def _():
                cp = _start_copy(x_hbm, o_hbm, sems.at[0], base, tail_rows)
                cp.wait()

    return kernel


def _pallas_hbm_copy(x2d, rows, cols, itemsize, sub_min):
    total_bytes = rows * cols * itemsize
    row_chunk = _pick_row_chunk(rows, cols, itemsize, sub_min)
    n_chunks = -(-rows // row_chunk)
    tail_rows = rows - (n_chunks - 1) * row_chunk
    split = (row_chunk % (2 * sub_min) == 0)

    kernel = _make_hbm_copy_kernel(row_chunk, tail_rows, n_chunks, split, sub_min)

    return pl.pallas_call(
        kernel,
        out_shape=jax.ShapeDtypeStruct((rows, cols), x2d.dtype),
        grid_spec=pltpu.PrefetchScalarGridSpec(
            num_scalar_prefetch=0,
            grid=(n_chunks,),
            in_specs=[pl.BlockSpec(memory_space=pl.ANY)],
            out_specs=pl.BlockSpec(memory_space=pl.ANY),
            scratch_shapes=[pltpu.SemaphoreType.DMA((2,))],
        ),
        compiler_params=pltpu.CompilerParams(
            dimension_semantics=("parallel",),
        ),
        cost_estimate=pl.CostEstimate(
            flops=0,
            transcendentals=0,
            bytes_accessed=2 * total_bytes,
        ),
    )(x2d)


def last_dim_reshape(x, shape):
    """Equivalent of LastDimReshape(shape)(x)."""
    *lead, d = x.shape
    new_last = tuple(int(s) for s in shape)
    prod = 1
    for s in new_last:
        prod *= s
    assert prod == d, f"prod(shape)={prod} must equal last dim {d}"
    out_shape = (*lead, *new_last)

    total = int(x.size)
    if total == 0:
        return jnp.reshape(x, out_shape)  # nothing to copy

    itemsize = jnp.dtype(x.dtype).itemsize
    sub_min = _sublane_min(itemsize)

    cols = _pick_lane_width(total)
    if cols is None:
        cols = _pick_fallback_cols(total)
    rows = total // cols

    # Flat lane-dense 2-D view: metadata-only reshape (row-major preserved).
    x2d = jnp.reshape(x, (rows, cols))

    out2d = _pallas_hbm_copy(x2d, rows, cols, itemsize, sub_min)

    # Final reshape: metadata only, exactly torch.reshape semantics.
    return jnp.reshape(out2d, out_shape)


if __name__ == "__main__":
    key = jax.random.PRNGKey(0)

    # 1) Small shape matching the module's typical use: (B, S, D) -> (B, S, 4, 8)
    B, S, D = 2, 8, 32
    target_shape = (4, 8)
    x = jax.random.normal(key, (B, S, D), dtype=jnp.float32)
    y = jax.block_until_ready(last_dim_reshape(x, target_shape))
    y_ref = jnp.reshape(x, (B, S, *target_shape))
    assert y.shape == (B, S, 4, 8), y.shape
    assert y.dtype == x.dtype
    assert bool(jnp.array_equal(y, y_ref))

    # 2) Moderate f32 shape exercising the multi-chunk, split-DMA path (4 chunks).
    k2 = jax.random.PRNGKey(1)
    x_big = jax.random.normal(k2, (16, 256, 512), dtype=jnp.float32)  # 8 MiB
    y_big = jax.block_until_ready(last_dim_reshape(x_big, (8, 64)))
    assert y_big.shape == (16, 256, 8, 64)
    assert bool(jnp.array_equal(y_big, jnp.reshape(x_big, (16, 256, 8, 64))))

    # 3) bf16 multi-chunk path (different sublane minimum).
    k3 = jax.random.PRNGKey(2)
    x_bf = jax.random.normal(k3, (8, 512, 512), dtype=jnp.bfloat16)  # 4 MiB
    y_bf = jax.block_until_ready(last_dim_reshape(x_bf, (4, 128)))
    assert y_bf.shape == (8, 512, 4, 128)
    assert bool(jnp.array_equal(y_bf, jnp.reshape(x_bf, (8, 512, 4, 128))))

    # 4) Shape producing a ragged tail chunk (static pl.when tail branch).
    k4 = jax.random.PRNGKey(3)
    x_rag = jax.random.normal(k4, (1000, 640), dtype=jnp.float32)
    y_rag = jax.block_until_ready(last_dim_reshape(x_rag, (10, 64)))
    assert y_rag.shape == (1000, 10, 64)
    assert bool(jnp.array_equal(y_rag, jnp.reshape(x_rag, (1000, 10, 64))))

    # 5) Awkward shape (total not a multiple of 128) exercising the fallback.
    k5 = jax.random.PRNGKey(4)
    x_odd = jax.random.normal(k5, (3, 5, 6), dtype=jnp.float32)
    y_odd = jax.block_until_ready(last_dim_reshape(x_odd, (2, 3)))
    assert y_odd.shape == (3, 5, 2, 3)
    assert bool(jnp.array_equal(y_odd, jnp.reshape(x_odd, (3, 5, 2, 3))))

    print("KERNEL_OK")
</pallas_src>

<mosaic_0001>
module attributes {stable_mosaic.version = 11 : i64} {
  func.func @kernel(%arg0: i32, %arg1: memref<1x512xf32, #tpu.memory_space<any>>, %arg2: memref<1x512xf32, #tpu.memory_space<any>>, %arg3: memref<2x!tpu.dma_semaphore, #tpu.memory_space<semaphore_mem>>) attributes {dimension_semantics = [#tpu.dimension_semantics<parallel>], iteration_bounds = array<i64: 1>, scalar_prefetch = 0 : i64, scratch_operands = 1 : i64, tpu.core_type = #tpu.core_type<tc>, window_params = [{}, {}]} {
    %c1_i32 = arith.constant 1 : i32
    %0 = arith.muli %arg0, %c1_i32 : i32
    %c0_i32 = arith.constant 0 : i32
    %c0_i32_0 = arith.constant 0 : i32
    %1 = tpu.memref_slice %arg1[%0, %c0_i32_0] : memref<1x512xf32, #tpu.memory_space<any>> -> memref<1x512xf32, #tpu.memory_space<any>>
    %c0_i32_1 = arith.constant 0 : i32
    %2 = tpu.memref_slice %arg2[%0, %c0_i32_1] : memref<1x512xf32, #tpu.memory_space<any>> -> memref<1x512xf32, #tpu.memory_space<any>>
    %3 = tpu.memref_slice %arg3[%c0_i32] : memref<2x!tpu.dma_semaphore, #tpu.memory_space<semaphore_mem>> -> memref<1x!tpu.dma_semaphore, #tpu.memory_space<semaphore_mem>>
    %4 = tpu.memref_squeeze %3 : memref<1x!tpu.dma_semaphore, #tpu.memory_space<semaphore_mem>> -> memref<!tpu.dma_semaphore, #tpu.memory_space<semaphore_mem>>
    tpu.enqueue_dma source(%1 : memref<1x512xf32, #tpu.memory_space<any>>) target(%2 : memref<1x512xf32, #tpu.memory_space<any>>) target_semaphore(%4 : memref<!tpu.dma_semaphore, #tpu.memory_space<semaphore_mem>>)
    %c0_i32_2 = arith.constant 0 : i32
    %c0_i32_3 = arith.constant 0 : i32
    %5 = tpu.memref_slice %arg1[%0, %c0_i32_3] : memref<1x512xf32, #tpu.memory_space<any>> -> memref<1x512xf32, #tpu.memory_space<any>>
    %c0_i32_4 = arith.constant 0 : i32
    %6 = tpu.memref_slice %arg2[%0, %c0_i32_4] : memref<1x512xf32, #tpu.memory_space<any>> -> memref<1x512xf32, #tpu.memory_space<any>>
    %7 = tpu.memref_slice %arg3[%c0_i32_2] : memref<2x!tpu.dma_semaphore, #tpu.memory_space<semaphore_mem>> -> memref<1x!tpu.dma_semaphore, #tpu.memory_space<semaphore_mem>>
    %8 = tpu.memref_squeeze %7 : memref<1x!tpu.dma_semaphore, #tpu.memory_space<semaphore_mem>> -> memref<!tpu.dma_semaphore, #tpu.memory_space<semaphore_mem>>
    tpu.wait_dma2 semaphore(%8 : memref<!tpu.dma_semaphore, #tpu.memory_space<semaphore_mem>>) src(%5 : memref<1x512xf32, #tpu.memory_space<any>>) dst(%6 : memref<1x512xf32, #tpu.memory_space<any>>)
    return
  }
}

</mosaic_0001>

<llo_original>
// kernel: tpu_custom_call.1
$region0: #{tpu_custom_call.1}
  #allocation0 [shape = 'u32[]', space=smem, size = 0x4, offset = 0x4, fixed_abs, tag = 'smem constant byte address 0x4 - core index']
  #allocation1 [shape = 'u32[72,128]{1,0:T(1,128)}', space=vmem, size = 0x9000, scoped, tag = 'internal scratch']
  #allocation2 [shape = 's32[2]{0}', space=sflag, size = 0x8, scoped, tag = 'scratch operand']
  #allocation3 [shape = 's32[]', space=sflag, size = 0x4, offset = 0, fixed_abs, tag = 'sflag constant byte address 0x0 - dummy sync flag']
  #allocation4 [shape = 'u32[0]{0}', space=smem, size = 0, offset = 0, fixed_abs, tag = 'smem constant byte address 0x0 - null']
  %s0 = inlined_call_operand.hbm [shape: f32[1,512], index: 0, kind: input, shape index: {}]
  %s1 = inlined_call_operand.hbm [shape: f32[1,512], index: 1, kind: output, shape index: {}]
  %s2 = sld [smem:[#allocation0]]
  $region2: #{tpu_custom_call.1} parent=0
    _
  %s4 = ssub.s32 1, %s2
  %s5 = scalar_select 0, %s4, %s2
  %s6 = smul.u32 0, 4
  %s7 = scalar_lea.hbm %s0, %s6
  %s8 = scalar_lea.hbm %s1, %s6
  %s10 = sshll.u32 1, 14
  %s11 = sxor.u32 4294967295, %s10
  %s13 = sshll.u32 %s7, 4
  %s14 = int_to_ptr.hbm [resolvable:$true] %s13
  %s15 = sshll.u32 %s8, 4
  %s16 = int_to_ptr.hbm [resolvable:$true] %s15
  %19 = dma.general %s14, 64, %s16, [#allocation2], [#allocation3], [#allocation4], 0, 0
  %s20 = smul.u32 1, 4
  %s21 = sshll.u32 %s20, 4
  %22 = dma.done [#allocation2], %s21
  %23 = vsyncmov [#allocation2]
  %s24 = vpop.sfrf %23
  %p25 = scmp.eq.s32.totalorder %s24, 0
  %p26 = pneg %p25
  %28 = shalt.err (%p26)
  %s29 = scalar_lea.sflag [#allocation2], 1
  %30 = vsyncmov %s29
  %s31 = vpop.sfrf %30
  %p32 = scmp.eq.s32.totalorder %s31, 0
  %p33 = pneg %p32
  %35 = shalt.err (%p33)

</llo_original>
